<compile_context>
chip_gen: v7x
topology: tpu7x:2x2x1
jax: 0.10.0
libtpu: 0.0.40
codegen_flags: <defaults>
</compile_context>

<pallas_src>
import math

import jax
import jax.numpy as jnp
from jax.experimental import pallas as pl
from jax.experimental.pallas import tpu as pltpu


def _conv_transpose1d_kernel(xp_ref, w_ref, b_ref, ye_ref, yo_ref):
    # xp_ref: (L+2, C_in)     zero-padded activations (one halo row each side)
    # w_ref : (4, C_in, C_out) per-tap weight matrices (resident across grid)
    # b_ref : (1, C_out)
    # ye_ref: (L, C_out)      even output positions t = 2m
    # yo_ref: (L, C_out)      odd  output positions t = 2m + 1
    L = ye_ref.shape[0]
    x_prev = xp_ref[0:L, :]        # x[m-1]   (zero at m == 0)
    x_cur = xp_ref[1:L + 1, :]     # x[m]
    x_next = xp_ref[2:L + 2, :]    # x[m+1]   (zero at m == L-1)
    bias = b_ref[...].astype(jnp.float32)

    y_even = (jnp.dot(x_cur, w_ref[1], preferred_element_type=jnp.float32)
              + jnp.dot(x_prev, w_ref[3], preferred_element_type=jnp.float32)
              + bias)
    y_odd = (jnp.dot(x_cur, w_ref[2], preferred_element_type=jnp.float32)
             + jnp.dot(x_next, w_ref[0], preferred_element_type=jnp.float32)
             + bias)

    # Single full-tile, lane-dense stores (last dim = dim, not split columns).
    ye_ref[...] = y_even.astype(ye_ref.dtype)
    yo_ref[...] = y_odd.astype(yo_ref.dtype)


def upsample1d(x, weight, bias):
    """ConvTranspose1d(dim, dim, kernel=4, stride=2, padding=1).

    x:      (B, C, L)         activations (PyTorch layout)
    weight: (C_in, C_out, 4)  PyTorch ConvTranspose1d weight
    bias:   (C_out,)
    returns (B, C_out, 2*L)
    """
    B, C, L = x.shape
    c_in, c_out, k = weight.shape
    assert c_in == C and k == 4
    dtype = x.dtype

    # Glue: channels-last + one zero halo row on each side of the length axis.
    xt = jnp.transpose(x, (0, 2, 1))             # (B, L, C)
    xp = jnp.pad(xt, ((0, 0), (1, 1), (0, 0)))   # (B, L+2, C)

    w_taps = jnp.transpose(weight, (2, 0, 1)).astype(dtype)   # (4, C_in, C_out)
    b2 = bias.reshape(1, c_out).astype(dtype)

    ye, yo = pl.pallas_call(
        _conv_transpose1d_kernel,
        out_shape=(jax.ShapeDtypeStruct((B, L, c_out), dtype),
                   jax.ShapeDtypeStruct((B, L, c_out), dtype)),
        grid=(B,),
        in_specs=[
            # Full (L+2, C) slab per batch; batch dim squeezed out of the ref.
            pl.BlockSpec((None, L + 2, C), lambda b: (b, 0, 0)),
            # Constant index_map -> weights stay resident across the grid.
            pl.BlockSpec((4, C, c_out), lambda b: (0, 0, 0)),
            pl.BlockSpec((1, c_out), lambda b: (0, 0)),
        ],
        out_specs=(
            pl.BlockSpec((None, L, c_out), lambda b: (b, 0, 0)),
            pl.BlockSpec((None, L, c_out), lambda b: (b, 0, 0)),
        ),
        compiler_params=pltpu.CompilerParams(
            dimension_semantics=("parallel",)),
    )(xp, w_taps, b2)
    # TODO(synk): for very long sequences, add an L-tiled grid axis with a
    # halo-aware manual DMA instead of one full-length slab per batch.

    # Interleave even/odd along length and return to PyTorch (B, C, 2L) layout
    # (one fused XLA reshape+transpose, no per-element work in the kernel).
    y = jnp.stack([ye, yo], axis=2).reshape(B, 2 * L, c_out)
    return jnp.transpose(y, (0, 2, 1))


def _reference(x, weight, bias):
    # Independent pure-JAX reference: transposed conv == conv over the
    # lhs-dilated input with a flipped / channel-swapped kernel.
    wr = jnp.transpose(jnp.flip(weight, axis=2), (1, 0, 2))   # (C_out, C_in, 4)
    out = jax.lax.conv_general_dilated(
        x, wr,
        window_strides=(1,),
        padding=[(2, 2)],                 # k - 1 - p = 4 - 1 - 1
        lhs_dilation=(2,),                # stride of the transposed conv
        rhs_dilation=(1,),
        dimension_numbers=("NCH", "OIH", "NCH"))
    return out + bias[None, :, None]


if __name__ == "__main__":
    key = jax.random.PRNGKey(0)
    kx, kw, kb = jax.random.split(key, 3)
    batch, dim, length = 2, 32, 16

    x = jax.random.normal(kx, (batch, dim, length), dtype=jnp.float32)
    # Match PyTorch's default ConvTranspose1d init range U(-s, s), s = 1/sqrt(C_in*K).
    s = 1.0 / math.sqrt(dim * 4)
    w = jax.random.uniform(kw, (dim, dim, 4), dtype=jnp.float32, minval=-s, maxval=s)
    b = jax.random.uniform(kb, (dim,), dtype=jnp.float32, minval=-s, maxval=s)

    out = upsample1d(x, w, b)
    out = jax.block_until_ready(out)

    ref = _reference(x, w, b)
    assert out.shape == (batch, dim, 2 * length), out.shape
    err = float(jnp.max(jnp.abs(out - ref)))
    assert jnp.allclose(out, ref, atol=2e-5, rtol=2e-5), err

    print("KERNEL_OK")
</pallas_src>

<mosaic_0001>
module attributes {stable_mosaic.version = 11 : i64} {
  func.func @_conv_transpose1d_kernel(%arg0: i32, %arg1: memref<1x18x32xf32, #tpu.memory_space<vmem>>, %arg2: memref<4x32x32xf32, #tpu.memory_space<vmem>>, %arg3: memref<1x32xf32, #tpu.memory_space<vmem>>, %arg4: memref<1x16x32xf32, #tpu.memory_space<vmem>>, %arg5: memref<1x16x32xf32, #tpu.memory_space<vmem>>) attributes {dimension_semantics = [#tpu.dimension_semantics<parallel>], iteration_bounds = array<i64: 2>, scalar_prefetch = 0 : i64, scratch_operands = 0 : i64, tpu.core_type = #tpu.core_type<tc>, window_params = [{transform_indices = @transform_0, window_bounds = array<i64: 1, 18, 32>}, {pipeline_mode = #tpu.pipeline_mode<synchronous>, transform_indices = @transform_1, window_bounds = array<i64: 4, 32, 32>}, {pipeline_mode = #tpu.pipeline_mode<synchronous>, transform_indices = @transform_2, window_bounds = array<i64: 1, 32>}, {transform_indices = @transform_3, window_bounds = array<i64: 1, 16, 32>}, {transform_indices = @transform_4, window_bounds = array<i64: 1, 16, 32>}]} {
    %c0 = arith.constant 0 : index
    %c0_0 = arith.constant 0 : index
    %c0_1 = arith.constant 0 : index
    %0 = vector.load %arg1[%c0, %c0_0, %c0_1] : memref<1x18x32xf32, #tpu.memory_space<vmem>>, vector<1x16x32xf32>
    %1 = vector.shape_cast %0 : vector<1x16x32xf32> to vector<16x32xf32>
    %c0_2 = arith.constant 0 : index
    %c1 = arith.constant 1 : index
    %c0_3 = arith.constant 0 : index
    %2 = vector.load %arg1[%c0_2, %c1, %c0_3] : memref<1x18x32xf32, #tpu.memory_space<vmem>>, vector<1x16x32xf32>
    %3 = vector.shape_cast %2 : vector<1x16x32xf32> to vector<16x32xf32>
    %c0_4 = arith.constant 0 : index
    %c2 = arith.constant 2 : index
    %c0_5 = arith.constant 0 : index
    %4 = vector.load %arg1[%c0_4, %c2, %c0_5] : memref<1x18x32xf32, #tpu.memory_space<vmem>>, vector<1x16x32xf32>
    %5 = vector.shape_cast %4 : vector<1x16x32xf32> to vector<16x32xf32>
    %c0_6 = arith.constant 0 : index
    %c0_7 = arith.constant 0 : index
    %6 = vector.load %arg3[%c0_6, %c0_7] : memref<1x32xf32, #tpu.memory_space<vmem>>, vector<1x32xf32>
    %c1_8 = arith.constant 1 : index
    %c0_9 = arith.constant 0 : index
    %c0_10 = arith.constant 0 : index
    %7 = vector.load %arg2[%c1_8, %c0_9, %c0_10] : memref<4x32x32xf32, #tpu.memory_space<vmem>>, vector<1x32x32xf32>
    %8 = vector.shape_cast %7 : vector<1x32x32xf32> to vector<32x32xf32>
    %cst = arith.constant dense<0.000000e+00> : vector<16x32xf32>
    %9 = tpu.matmul %3, %8, %cst {dimension_numbers = #tpu.dot_dimension_numbers<[1], [0], [0], [1], [0, 0, 1, 1], [], []>} : vector<16x32xf32>, vector<32x32xf32>, vector<16x32xf32> -> vector<16x32xf32>
    %c3 = arith.constant 3 : index
    %c0_11 = arith.constant 0 : index
    %c0_12 = arith.constant 0 : index
    %10 = vector.load %arg2[%c3, %c0_11, %c0_12] : memref<4x32x32xf32, #tpu.memory_space<vmem>>, vector<1x32x32xf32>
    %11 = vector.shape_cast %10 : vector<1x32x32xf32> to vector<32x32xf32>
    %cst_13 = arith.constant dense<0.000000e+00> : vector<16x32xf32>
    %12 = tpu.matmul %1, %11, %cst_13 {dimension_numbers = #tpu.dot_dimension_numbers<[1], [0], [0], [1], [0, 0, 1, 1], [], []>} : vector<16x32xf32>, vector<32x32xf32>, vector<16x32xf32> -> vector<16x32xf32>
    %13 = arith.addf %9, %12 : vector<16x32xf32>
    %14 = vector.broadcast %6 : vector<1x32xf32> to vector<16x32xf32>
    %15 = arith.addf %13, %14 : vector<16x32xf32>
    %c2_14 = arith.constant 2 : index
    %c0_15 = arith.constant 0 : index
    %c0_16 = arith.constant 0 : index
    %16 = vector.load %arg2[%c2_14, %c0_15, %c0_16] : memref<4x32x32xf32, #tpu.memory_space<vmem>>, vector<1x32x32xf32>
    %17 = vector.shape_cast %16 : vector<1x32x32xf32> to vector<32x32xf32>
    %cst_17 = arith.constant dense<0.000000e+00> : vector<16x32xf32>
    %18 = tpu.matmul %3, %17, %cst_17 {dimension_numbers = #tpu.dot_dimension_numbers<[1], [0], [0], [1], [0, 0, 1, 1], [], []>} : vector<16x32xf32>, vector<32x32xf32>, vector<16x32xf32> -> vector<16x32xf32>
    %c0_18 = arith.constant 0 : index
    %c0_19 = arith.constant 0 : index
    %c0_20 = arith.constant 0 : index
    %19 = vector.load %arg2[%c0_18, %c0_19, %c0_20] : memref<4x32x32xf32, #tpu.memory_space<vmem>>, vector<1x32x32xf32>
    %20 = vector.shape_cast %19 : vector<1x32x32xf32> to vector<32x32xf32>
    %cst_21 = arith.constant dense<0.000000e+00> : vector<16x32xf32>
    %21 = tpu.matmul %5, %20, %cst_21 {dimension_numbers = #tpu.dot_dimension_numbers<[1], [0], [0], [1], [0, 0, 1, 1], [], []>} : vector<16x32xf32>, vector<32x32xf32>, vector<16x32xf32> -> vector<16x32xf32>
    %22 = arith.addf %18, %21 : vector<16x32xf32>
    %23 = vector.broadcast %6 : vector<1x32xf32> to vector<16x32xf32>
    %24 = arith.addf %22, %23 : vector<16x32xf32>
    %c0_22 = arith.constant 0 : index
    %c0_23 = arith.constant 0 : index
    %c0_24 = arith.constant 0 : index
    %25 = vector.load %arg4[%c0_22, %c0_23, %c0_24] : memref<1x16x32xf32, #tpu.memory_space<vmem>>, vector<1x16x32xf32>
    %26 = vector.shape_cast %25 : vector<1x16x32xf32> to vector<16x32xf32>
    %27 = vector.shape_cast %15 : vector<16x32xf32> to vector<1x16x32xf32>
    tpu.vector_store %arg4[%c0_22, %c0_23, %c0_24], %27 {strides = array<i32>} : memref<1x16x32xf32, #tpu.memory_space<vmem>>, vector<1x16x32xf32>,
    %c0_25 = arith.constant 0 : index
    %c0_26 = arith.constant 0 : index
    %c0_27 = arith.constant 0 : index
    %28 = vector.load %arg5[%c0_25, %c0_26, %c0_27] : memref<1x16x32xf32, #tpu.memory_space<vmem>>, vector<1x16x32xf32>
    %29 = vector.shape_cast %28 : vector<1x16x32xf32> to vector<16x32xf32>
    %30 = vector.shape_cast %24 : vector<16x32xf32> to vector<1x16x32xf32>
    tpu.vector_store %arg5[%c0_25, %c0_26, %c0_27], %30 {strides = array<i32>} : memref<1x16x32xf32, #tpu.memory_space<vmem>>, vector<1x16x32xf32>,
    return
  }
  func.func @transform_0(%arg0: i32) -> (i32, i32, i32) {
    %c0_i32 = arith.constant 0 : i32
    %c0_i32_0 = arith.constant 0 : i32
    %c0_i32_1 = arith.constant 0 : i32
    return %arg0, %c0_i32, %c0_i32_0 : i32, i32, i32
  }
  func.func @transform_1(%arg0: i32) -> (i32, i32, i32) {
    %c0_i32 = arith.constant 0 : i32
    %c0_i32_0 = arith.constant 0 : i32
    %c0_i32_1 = arith.constant 0 : i32
    %c0_i32_2 = arith.constant 0 : i32
    return %c0_i32, %c0_i32_0, %c0_i32_1 : i32, i32, i32
  }
  func.func @transform_2(%arg0: i32) -> (i32, i32) {
    %c0_i32 = arith.constant 0 : i32
    %c0_i32_0 = arith.constant 0 : i32
    %c0_i32_1 = arith.constant 0 : i32
    return %c0_i32, %c0_i32_0 : i32, i32
  }
  func.func @transform_3(%arg0: i32) -> (i32, i32, i32) {
    %c0_i32 = arith.constant 0 : i32
    %c0_i32_0 = arith.constant 0 : i32
    %c0_i32_1 = arith.constant 0 : i32
    return %arg0, %c0_i32, %c0_i32_0 : i32, i32, i32
  }
  func.func @transform_4(%arg0: i32) -> (i32, i32, i32) {
    %c0_i32 = arith.constant 0 : i32
    %c0_i32_0 = arith.constant 0 : i32
    %c0_i32_1 = arith.constant 0 : i32
    return %arg0, %c0_i32, %c0_i32_0 : i32, i32, i32
  }
}

</mosaic_0001>

<llo_original>
// kernel: tpu_custom_call.1
$region0: #{tpu_custom_call.1}
  #allocation0 [shape = 'u32[]', space=smem, size = 0x4, offset = 0x4, fixed_abs, tag = 'smem constant byte address 0x4 - core index']
  #allocation1 [shape = 'u32[144,128]{1,0:T(1,128)}', space=vmem, size = 0x12000, scoped, tag = 'internal scratch']
  %s0 = inlined_call_operand.vmem [shape: f32[2,18,32], index: 0, kind: input, shape index: {}]
  %s1 = inlined_call_operand.hbm [shape: f32[4,32,32], index: 1, kind: input, shape index: {}]
  %s2 = inlined_call_operand.vmem [shape: f32[1,32], index: 2, kind: input, shape index: {}]
  %s3 = inlined_call_operand.hbm [shape: f32[2,16,32], index: 3, kind: output, shape index: {0}]
  %s4 = inlined_call_operand.hbm [shape: f32[2,16,32], index: 4, kind: output, shape index: {1}]
  %5 = xla_tuple %s3, %s4
  %s6 = sld [smem:[#allocation0]]
  $region57: #{tpu_custom_call.1} parent=0
    _
  %s8 = ssub.s32 1, %s6
  %s9 = scalar_select 0, %s8, %s6
  $region1: #{tpu_custom_call.1} parent=0
    #allocation2 [shape = 'u8[65536]{0}', space=vmem, size = 0x10000, scoped, tag = 'input window, operand 1, single buffered']
    #allocation3 [shape = 's32[2]{0}', space=sflag, size = 0x8, scoped, tag = 'scoped memory for tpu_custom_call.1']
    #allocation4 [shape = 's32[2]{0}', space=sflag, size = 0x8, scoped, tag = 'scoped memory for tpu_custom_call.1']
    #allocation5 [shape = 'u8[16384]{0}', space=vmem, size = 0x4000, scoped, tag = 'output window, operand 0']
    #allocation6 [shape = 'u8[16384]{0}', space=vmem, size = 0x4000, scoped, tag = 'output window, operand 1']
    #allocation7 [shape = 's32[2]{0}', space=sflag, size = 0x8, scoped, tag = 'scoped memory for tpu_custom_call.1']
    %10 = vsyncpa [#allocation3], 0
    %11 = vsyncpa [#allocation4], 0
    %s12 = scalar_lea.sflag [#allocation4], 1
    %13 = vsyncpa %s12, 0
    %14 = vsyncpa [#allocation7], 0
    %s15 = scalar_lea.sflag [#allocation7], 1
    %16 = vsyncpa %s15, 0
    loop: start=0, step=1, limit=4
    $region2: #{tpu_custom_call.1} parent=1 // loop_pre_header
      _
    $region3: #{tpu_custom_call.1} parent=1 // loop_header
      %s18 = sphi 0, %s22
      %p19 = scmp.ge.s32.totalorder %s18, 4
      %s28 = sphi 0, %s30
      %s31 = sphi 0, %s28
      %s32 = sphi 0, %s31
      %s48 = sphi 0, %s32
      %s52 = sphi 0, %s52
      %s54 = sphi 0, %s52
      %s55 = sphi 0, %s54
      %s69 = sphi 0, %s55
      %s73 = sphi 0, %s73
      %s75 = sphi 0, %s73
      %s76 = sphi 0, %s75
      %s90 = sphi 0, %s76
      %s96 = sphi 0, %s98
      %s99 = sphi 0, %s96
      %s100 = sphi 0, %s99
      %s116 = sphi 0, %s100
      %s122 = sphi 0, %s124
      %s125 = sphi 0, %s122
      %s126 = sphi 0, %s125
      %s142 = sphi 0, %s126
    $region4: #{tpu_custom_call.1} parent=1 // loop_header_branch
      %21 = sbr.rel (%p19) target = $region8
    $region5: #{tpu_custom_call.1} parent=1 // loop_body
      %s23 = ssub.s32 %s18, 1
      %s24 = ssub.s32 %s18, 2
      %s25 = sadd.s32 %s18, 1
      %s26 = ssub.s32 %s18, %s25
      %p27 = scmp.eq.s32.totalorder %s26, 0
      %s29 = sadd.s32 %s28, 1
      %s30 = scalar_select %p27, %s28, %s29
      %p33 = pneg %p27
      %p34 = scmp.eq.s32.totalorder %s18, 1
      %p35 = por %p33, %p34
      %p36 = scmp.ne.s32.totalorder %s28, %s31
      %p37 = scmp.eq.s32.totalorder %s18, 0
      %p38 = por %p36, %p37
      %p39 = scmp.ne.s32.totalorder %s28, %s31
      %p40 = scmp.eq.s32.totalorder %s23, 1
      %p41 = por %p39, %p40
      %p42 = scmp.ne.s32.totalorder %s31, %s32
      %p43 = scmp.eq.s32.totalorder %s23, 0
      %p44 = por %p42, %p43
      %p45 = scmp.ne.s32.totalorder %s31, %s32
      %p46 = scmp.eq.s32.totalorder %s24, 1
      %p47 = por %p45, %p46
      %p49 = scmp.ne.s32.totalorder %s32, %s48
      %p50 = scmp.eq.s32.totalorder %s24, 0
      %p51 = por %p49, %p50
      %s53 = sadd.s32 %s52, 1
      %p56 = scmp.eq.s32.totalorder %s18, 1
      %p57 = scmp.ne.s32.totalorder %s52, %s54
      %p58 = scmp.eq.s32.totalorder %s18, 0
      %p59 = por %p57, %p58
      %p60 = scmp.ne.s32.totalorder %s52, %s54
      %p61 = scmp.eq.s32.totalorder %s23, 1
      %p62 = por %p60, %p61
      %p63 = scmp.ne.s32.totalorder %s54, %s55
      %p64 = scmp.eq.s32.totalorder %s23, 0
      %p65 = por %p63, %p64
      %p66 = scmp.ne.s32.totalorder %s54, %s55
      %p67 = scmp.eq.s32.totalorder %s24, 1
      %p68 = por %p66, %p67
      %p70 = scmp.ne.s32.totalorder %s55, %s69
      %p71 = scmp.eq.s32.totalorder %s24, 0
      %p72 = por %p70, %p71
      %s74 = sadd.s32 %s73, 1
      %p77 = scmp.eq.s32.totalorder %s18, 1
      %p78 = scmp.ne.s32.totalorder %s73, %s75
      %p79 = scmp.eq.s32.totalorder %s18, 0
      %p80 = por %p78, %p79
      %p81 = scmp.ne.s32.totalorder %s73, %s75
      %p82 = scmp.eq.s32.totalorder %s23, 1
      %p83 = por %p81, %p82
      %p84 = scmp.ne.s32.totalorder %s75, %s76
      %p85 = scmp.eq.s32.totalorder %s23, 0
      %p86 = por %p84, %p85
      %p87 = scmp.ne.s32.totalorder %s75, %s76
      %p88 = scmp.eq.s32.totalorder %s24, 1
      %p89 = por %p87, %p88
      %p91 = scmp.ne.s32.totalorder %s76, %s90
      %p92 = scmp.eq.s32.totalorder %s24, 0
      %p93 = por %p91, %p92
      %s94 = ssub.s32 %s18, %s25
      %p95 = scmp.eq.s32.totalorder %s94, 0
      %s97 = sadd.s32 %s96, 1
      %s98 = scalar_select %p95, %s96, %s97
      %p101 = pneg %p95
      %p102 = scmp.eq.s32.totalorder %s18, 1
      %p103 = por %p101, %p102
      %p104 = scmp.ne.s32.totalorder %s96, %s99
      %p105 = scmp.eq.s32.totalorder %s18, 0
      %p106 = por %p104, %p105
      %p107 = scmp.ne.s32.totalorder %s96, %s99
      %p108 = scmp.eq.s32.totalorder %s23, 1
      %p109 = por %p107, %p108
      %p110 = scmp.ne.s32.totalorder %s99, %s100
      %p111 = scmp.eq.s32.totalorder %s23, 0
      %p112 = por %p110, %p111
      %p113 = scmp.ne.s32.totalorder %s99, %s100
      %p114 = scmp.eq.s32.totalorder %s24, 1
      %p115 = por %p113, %p114
      %p117 = scmp.ne.s32.totalorder %s100, %s116
      %p118 = scmp.eq.s32.totalorder %s24, 0
      %p119 = por %p117, %p118
      %s120 = ssub.s32 %s18, %s25
      %p121 = scmp.eq.s32.totalorder %s120, 0
      %s123 = sadd.s32 %s122, 1
      %s124 = scalar_select %p121, %s122, %s123
      %p127 = pneg %p121
      %p128 = scmp.eq.s32.totalorder %s18, 1
      %p129 = por %p127, %p128
      %p130 = scmp.ne.s32.totalorder %s122, %s125
      %p131 = scmp.eq.s32.totalorder %s18, 0
      %p132 = por %p130, %p131
      %p133 = scmp.ne.s32.totalorder %s122, %s125
      %p134 = scmp.eq.s32.totalorder %s23, 1
      %p135 = por %p133, %p134
      %p136 = scmp.ne.s32.totalorder %s125, %s126
      %p137 = scmp.eq.s32.totalorder %s23, 0
      %p138 = por %p136, %p137
      %p139 = scmp.ne.s32.totalorder %s125, %s126
      %p140 = scmp.eq.s32.totalorder %s24, 1
      %p141 = por %p139, %p140
      %p143 = scmp.ne.s32.totalorder %s126, %s142
      %p144 = scmp.eq.s32.totalorder %s24, 0
      %p145 = por %p143, %p144
      %p146 = scmp.le.s32.totalorder 1, %s18
      %p147 = scmp.lt.s32.totalorder %s18, 3
      %p148 = pnand %p146, %p147
      %p149 = pneg %p148
      // Predicated region
      $region9: #{tpu_custom_call.1} parent=5 // pred_check
        _
      $region10: #{tpu_custom_call.1} parent=5 // pred_check_branch
        %151 = sbr.rel (%p148) target = $region12
      $region11: #{tpu_custom_call.1} parent=5 // pred_region
        %s152 = ssub.s32 %s18, 1
        // Predicated region
        $region13: #{tpu_custom_call.1} parent=11 // pred_check
          %p153 = pneg %p65
        $region14: #{tpu_custom_call.1} parent=11 // pred_check_branch
          %155 = sbr.rel (%p153) target = $region16
        $region15: #{tpu_custom_call.1} parent=11 // pred_region
          %s157 = ssub.s32 2048, 2048
          %158 = vsyncadd [#allocation3], %s157
          %s159 = sshll.u32 [#allocation2], 4
          %s160 = int_to_ptr.vmem [resolvable:$true] %s159
          %165 = dma.hbm_to_vmem [thread:$0]  %s1, 2048, %s160, [#allocation3], 128, 128, 8
        $region16: #{tpu_custom_call.1} parent=11 // pred_fallthru
          _
        // Predicated region
        $region17: #{tpu_custom_call.1} parent=11 // pred_check
          %p166 = pneg %p86
        $region18: #{tpu_custom_call.1} parent=11 // pred_check_branch
          %168 = sbr.rel (%p166) target = $region20
        $region19: #{tpu_custom_call.1} parent=11 // pred_region
          _
        $region20: #{tpu_custom_call.1} parent=11 // pred_fallthru
          _
      $region12: #{tpu_custom_call.1} parent=5 // pred_fallthru
        _
      %p169 = scmp.lt.s32.totalorder %s18, 2
      // Predicated region
      $region21: #{tpu_custom_call.1} parent=5 // pred_check
        %p170 = pneg %p169
      $region22: #{tpu_custom_call.1} parent=5 // pred_check_branch
        %172 = sbr.rel (%p170) target = $region24
      $region23: #{tpu_custom_call.1} parent=5 // pred_region
        // Predicated region
        $region25: #{tpu_custom_call.1} parent=23 // pred_check
          %p173 = pneg %p38
        $region26: #{tpu_custom_call.1} parent=23 // pred_check_branch
          %175 = sbr.rel (%p173) target = $region28
        $region27: #{tpu_custom_call.1} parent=23 // pred_region
          %p176 = scmp.lt.s32.totalorder %s18, 1
          %s177 = scalar_select %p176, %s18, 1
          %s178 = smul.addr %s177, 3
          %s179 = smul.addr %s178, 8
          %s180 = scalar_lea.vmem %s0, %s179
        $region28: #{tpu_custom_call.1} parent=23 // pred_fallthru
          _
      $region24: #{tpu_custom_call.1} parent=5 // pred_fallthru
        _
      %p181 = scmp.le.s32.totalorder 1, %s18
      %p182 = scmp.lt.s32.totalorder %s18, 3
      %p183 = pnand %p181, %p182
      %p184 = pneg %p183
      // Predicated region
      $region29: #{tpu_custom_call.1} parent=5 // pred_check
        _
      $region30: #{tpu_custom_call.1} parent=5 // pred_check_branch
        %186 = sbr.rel (%p183) target = $region32
      $region31: #{tpu_custom_call.1} parent=5 // pred_region
        %s187 = ssub.s32 %s18, 1
        // Predicated region
        $region33: #{tpu_custom_call.1} parent=31 // pred_check
          %p188 = pneg %p65
        $region34: #{tpu_custom_call.1} parent=31 // pred_check_branch
          %190 = sbr.rel (%p188) target = $region36
        $region35: #{tpu_custom_call.1} parent=31 // pred_region
          %191 = dma.done [#allocation3], 2048
        $region36: #{tpu_custom_call.1} parent=31 // pred_fallthru
          _
        %p192 = scmp.lt.s32.totalorder %s23, 1
        %s193 = scalar_select %p192, %s23, 1
        %s194 = smul.addr %s193, 3
        %s195 = smul.addr %s194, 8
        %s196 = scalar_lea.vmem %s0, %s195
        %p197 = pneg %p44
        %p198 = pneg %p41
        %p199 = pneg %p65
        %p200 = pneg %p62
        %p201 = pneg %p86
        %p202 = pneg %p83
        %p203 = pneg %p112
        %p204 = pneg %p109
        %s205 = sand.u32 %s99, 1
        %s206 = scalar_lea.sflag [#allocation4], %s205
        %s207 = sand.u32 %s99, 1
        %s208 = smul.addr %s207, 16
        %s209 = scalar_lea.vmem [#allocation5], %s208
        %p210 = pneg %p138
        %p211 = pneg %p135
        %s212 = sand.u32 %s125, 1
        %s213 = scalar_lea.sflag [#allocation7], %s212
        %s214 = sand.u32 %s125, 1
        %s215 = smul.addr %s214, 16
        %s216 = scalar_lea.vmem [#allocation6], %s215
        %p217 = scmp.lt.s32.totalorder %s23, 1
        %s218 = scalar_select %p217, %s23, 1
        %s219 = smul.addr %s218, 3
        %s220 = smul.addr %s219, 8
        %s221 = scalar_lea.vmem %s0, %s220
        %v222 = vld [vmem:[%s221] sm:$0xff]
        %v223 = vld [vmem:[%s221 + $0x8] sm:$0xff]
        %v224 = vld [vmem:[%s221 + $0x1] sm:$0xff]
        %v225 = vld [vmem:[%s221 + $0x9] sm:$0xff]
        %v226 = vld [vmem:[%s221 + $0x2] sm:$0xff]
        %v227 = vld [vmem:[%s221 + $0xa] sm:$0xff]
        %v228 = vld [vmem:[%s2] sm:$0x1]
        %s229 = scalar_lea.vmem [#allocation2], 32
        %v230 = vld [vmem:[%s229] sm:$0xff]
        %v231 = vld [vmem:[%s229 + $0x8] sm:$0xff]
        %v232 = vld [vmem:[%s229 + $0x10] sm:$0xff]
        %v233 = vld [vmem:[%s229 + $0x18] sm:$0xff]
        %s234 = scalar_lea.vmem [#allocation2], 96
        %v235 = vld [vmem:[%s234] sm:$0xff]
        %v236 = vld [vmem:[%s234 + $0x8] sm:$0xff]
        %v237 = vld [vmem:[%s234 + $0x10] sm:$0xff]
        %v238 = vld [vmem:[%s234 + $0x18] sm:$0xff]
        %vm239 = vcmask 261120
        %v241 = vsel %vm239, %v222, 0
        %v244 = vsel %vm239, %v223, 0
        %246 = vmatprep.subr.mxu0 0.0
        %247 = vmatpush1.msra.mxu0 %v235
        %248 = vmatprep.subr.mxu0 0.0
        %249 = vmatpush1.msra.mxu0 %v236
        %250 = vmatprep.subr.mxu0 0.0
        %251 = vmatpush1.msra.mxu0 %v237
        %252 = vmatprep.subr.mxu0 0.0
        %253 = vmatpush1.msra.mxu0 %v238
        %254 = vmatprep.subr.mxu0 0.0
        %255 = vmatpush1.msra.mxu0 0.0
        %256 = vmatprep.subr.mxu0 0.0
        %257 = vmatpush1.msra.mxu0 0.0
        %258 = vmatprep.subr.mxu0 0.0
        %259 = vmatpush1.msra.mxu0 0.0
        %260 = vmatprep.subr.mxu0 0.0
        %261 = vmatpush1.msra.mxu0 0.0
        %262 = vmatprep.subr.mxu0 0.0
        %263 = vmatpush1.msra.mxu0 0.0
        %264 = vmatprep.subr.mxu0 0.0
        %265 = vmatpush1.msra.mxu0 0.0
        %266 = vmatprep.subr.mxu0 0.0
        %267 = vmatpush1.msra.mxu0 0.0
        %268 = vmatprep.subr.mxu0 0.0
        %269 = vmatpush1.msra.mxu0 0.0
        %270 = vmatprep.subr.mxu0 0.0
        %271 = vmatpush1.msra.mxu0 0.0
        %272 = vmatprep.subr.mxu0 0.0
        %273 = vmatpush1.msra.mxu0 0.0
        %274 = vmatprep.subr.mxu0 0.0
        %275 = vmatpush1.msra.mxu0 0.0
        %276 = vmatprep.subr.mxu0 0.0
        %277 = vmatpush1.msra.mxu0 0.0
        %278 = vmatprep.subr.mxu0 0.0
        %279 = vmatpush1.msra.mxu0 0.0
        %280 = vmatprep.subr.mxu0 0.0
        %281 = vmatpush1.msra.mxu0 0.0
        %282 = vmatprep.subr.mxu0 0.0
        %283 = vmatpush1.msra.mxu0 0.0
        %284 = vmatprep.subr.mxu0 0.0
        %285 = vmatpush1.msra.mxu0 0.0
        %286 = vmatprep.subr.mxu0 0.0
        %287 = vmatpush1.msra.mxu0 0.0
        %288 = vmatprep.subr.mxu0 0.0
        %289 = vmatpush1.msra.mxu0 0.0
        %290 = vmatprep.subr.mxu0 0.0
        %291 = vmatpush1.msra.mxu0 0.0
        %292 = vmatprep.subr.mxu0 0.0
        %293 = vmatpush1.msra.mxu0 0.0
        %294 = vmatprep.subr.mxu0 0.0
        %295 = vmatpush1.msra.mxu0 0.0
        %296 = vmatprep.subr.mxu0 0.0
        %297 = vmatpush1.msra.mxu0 0.0
        %298 = vmatprep.subr.mxu0 0.0
        %299 = vmatpush1.msra.mxu0 0.0
        %300 = vmatprep.subr.mxu0 0.0
        %301 = vmatpush1.msra.mxu0 0.0
        %302 = vmatprep.subr.mxu0 0.0
        %303 = vmatpush1.msra.mxu0 0.0
        %304 = vmatprep.subr.mxu0 0.0
        %305 = vmatpush1.msra.mxu0 0.0
        %306 = vmatprep.subr.mxu0 0.0
        %307 = vmatpush1.msra.mxu0 0.0
        %308 = vmatprep.subr.mxu0 0.0
        %309 = vmatpush1.msra.mxu0 0.0
        %310 = vmatprep.mubr.f32.mxu0 0.0
        %311 = vmatmul.mubr.f32.gmra.mrb[0].mxu0 %v241
        %v312 = vpop.f32.mrb[0].mxu0
        %v313 = vadd.f32 0.0, %v312
        %v314 = vpop.f32.mrb[0].mxu0
        %315 = vmatprep.mubr.f32.mxu0 0.0
        %316 = vmatmul.mubr.f32.gmra.mrb[0].mxu0 %v244
        %v317 = vpop.f32.mrb[0].mxu0
        %v318 = vadd.f32 0.0, %v317
        %v319 = vpop.f32.mrb[0].mxu0
        %320 = vdwg.mxu0
        %v322 = vsel %vm239, %v224, 0
        %v325 = vsel %vm239, %v225, 0
        %327 = vmatprep.subr.mxu0 0.0
        %328 = vmatpush1.msra.mxu0 %v230
        %329 = vmatprep.subr.mxu0 0.0
        %330 = vmatpush1.msra.mxu0 %v231
        %331 = vmatprep.subr.mxu0 0.0
        %332 = vmatpush1.msra.mxu0 %v232
        %333 = vmatprep.subr.mxu0 0.0
        %334 = vmatpush1.msra.mxu0 %v233
        %335 = vmatprep.subr.mxu0 0.0
        %336 = vmatpush1.msra.mxu0 0.0
        %337 = vmatprep.subr.mxu0 0.0
        %338 = vmatpush1.msra.mxu0 0.0
        %339 = vmatprep.subr.mxu0 0.0
        %340 = vmatpush1.msra.mxu0 0.0
        %341 = vmatprep.subr.mxu0 0.0
        %342 = vmatpush1.msra.mxu0 0.0
        %343 = vmatprep.subr.mxu0 0.0
        %344 = vmatpush1.msra.mxu0 0.0
        %345 = vmatprep.subr.mxu0 0.0
        %346 = vmatpush1.msra.mxu0 0.0
        %347 = vmatprep.subr.mxu0 0.0
        %348 = vmatpush1.msra.mxu0 0.0
        %349 = vmatprep.subr.mxu0 0.0
        %350 = vmatpush1.msra.mxu0 0.0
        %351 = vmatprep.subr.mxu0 0.0
        %352 = vmatpush1.msra.mxu0 0.0
        %353 = vmatprep.subr.mxu0 0.0
        %354 = vmatpush1.msra.mxu0 0.0
        %355 = vmatprep.subr.mxu0 0.0
        %356 = vmatpush1.msra.mxu0 0.0
        %357 = vmatprep.subr.mxu0 0.0
        %358 = vmatpush1.msra.mxu0 0.0
        %359 = vmatprep.subr.mxu0 0.0
        %360 = vmatpush1.msra.mxu0 0.0
        %361 = vmatprep.subr.mxu0 0.0
        %362 = vmatpush1.msra.mxu0 0.0
        %363 = vmatprep.subr.mxu0 0.0
        %364 = vmatpush1.msra.mxu0 0.0
        %365 = vmatprep.subr.mxu0 0.0
        %366 = vmatpush1.msra.mxu0 0.0
        %367 = vmatprep.subr.mxu0 0.0
        %368 = vmatpush1.msra.mxu0 0.0
        %369 = vmatprep.subr.mxu0 0.0
        %370 = vmatpush1.msra.mxu0 0.0
        %371 = vmatprep.subr.mxu0 0.0
        %372 = vmatpush1.msra.mxu0 0.0
        %373 = vmatprep.subr.mxu0 0.0
        %374 = vmatpush1.msra.mxu0 0.0
        %375 = vmatprep.subr.mxu0 0.0
        %376 = vmatpush1.msra.mxu0 0.0
        %377 = vmatprep.subr.mxu0 0.0
        %378 = vmatpush1.msra.mxu0 0.0
        %379 = vmatprep.subr.mxu0 0.0
        %380 = vmatpush1.msra.mxu0 0.0
        %381 = vmatprep.subr.mxu0 0.0
        %382 = vmatpush1.msra.mxu0 0.0
        %383 = vmatprep.subr.mxu0 0.0
        %384 = vmatpush1.msra.mxu0 0.0
        %385 = vmatprep.subr.mxu0 0.0
        %386 = vmatpush1.msra.mxu0 0.0
        %387 = vmatprep.subr.mxu0 0.0
        %388 = vmatpush1.msra.mxu0 0.0
        %389 = vmatprep.subr.mxu0 0.0
        %390 = vmatpush1.msra.mxu0 0.0
        %391 = vmatprep.mubr.f32.mxu0 0.0
        %392 = vmatmul.mubr.f32.gmra.mrb[0].mxu0 %v322
        %v393 = vpop.f32.mrb[0].mxu0
        %v394 = vadd.f32 %v313, %v393
        %v395 = vpop.f32.mrb[0].mxu0
        %396 = vmatprep.mubr.f32.mxu0 0.0
        %397 = vmatmul.mubr.f32.gmra.mrb[0].mxu0 %v325
        %v398 = vpop.f32.mrb[0].mxu0
        %v399 = vadd.f32 %v318, %v398
        %v400 = vpop.f32.mrb[0].mxu0
        %401 = vdwg.mxu0
        %v403 = vlaneseq
        %v404 = vshrl.u32 %v403, 7
        %v405 = vsub.s32 0, %v404
        %v406 = vrot.slane %v228, %v405
        %v408 = vadd.f32 %v394, %v406
        %v409 = vadd.f32 %v399, %v406
        %s410 = scalar_lea.vmem [#allocation2], 64
        %v411 = vld [vmem:[%s410] sm:$0xff]
        %v412 = vld [vmem:[%s410 + $0x8] sm:$0xff]
        %v413 = vld [vmem:[%s410 + $0x10] sm:$0xff]
        %v414 = vld [vmem:[%s410 + $0x18] sm:$0xff]
        %v415 = vld [vmem:[#allocation2] sm:$0xff]
        %v416 = vld [vmem:[#allocation2 + $0x8] sm:$0xff]
        %v417 = vld [vmem:[#allocation2 + $0x10] sm:$0xff]
        %v418 = vld [vmem:[#allocation2 + $0x18] sm:$0xff]
        %v420 = vsel %vm239, %v226, 0
        %v423 = vsel %vm239, %v227, 0
        %425 = vmatprep.subr.mxu0 0.0
        %426 = vmatpush1.msra.mxu0 %v415
        %427 = vmatprep.subr.mxu0 0.0
        %428 = vmatpush1.msra.mxu0 %v416
        %429 = vmatprep.subr.mxu0 0.0
        %430 = vmatpush1.msra.mxu0 %v417
        %431 = vmatprep.subr.mxu0 0.0
        %432 = vmatpush1.msra.mxu0 %v418
        %433 = vmatprep.subr.mxu0 0.0
        %434 = vmatpush1.msra.mxu0 0.0
        %435 = vmatprep.subr.mxu0 0.0
        %436 = vmatpush1.msra.mxu0 0.0
        %437 = vmatprep.subr.mxu0 0.0
        %438 = vmatpush1.msra.mxu0 0.0
        %439 = vmatprep.subr.mxu0 0.0
        %440 = vmatpush1.msra.mxu0 0.0
        %441 = vmatprep.subr.mxu0 0.0
        %442 = vmatpush1.msra.mxu0 0.0
        %443 = vmatprep.subr.mxu0 0.0
        %444 = vmatpush1.msra.mxu0 0.0
        %445 = vmatprep.subr.mxu0 0.0
        %446 = vmatpush1.msra.mxu0 0.0
        %447 = vmatprep.subr.mxu0 0.0
        %448 = vmatpush1.msra.mxu0 0.0
        %449 = vmatprep.subr.mxu0 0.0
        %450 = vmatpush1.msra.mxu0 0.0
        %451 = vmatprep.subr.mxu0 0.0
        %452 = vmatpush1.msra.mxu0 0.0
        %453 = vmatprep.subr.mxu0 0.0
        %454 = vmatpush1.msra.mxu0 0.0
        %455 = vmatprep.subr.mxu0 0.0
        %456 = vmatpush1.msra.mxu0 0.0
        %457 = vmatprep.subr.mxu0 0.0
        %458 = vmatpush1.msra.mxu0 0.0
        %459 = vmatprep.subr.mxu0 0.0
        %460 = vmatpush1.msra.mxu0 0.0
        %461 = vmatprep.subr.mxu0 0.0
        %462 = vmatpush1.msra.mxu0 0.0
        %463 = vmatprep.subr.mxu0 0.0
        %464 = vmatpush1.msra.mxu0 0.0
        %465 = vmatprep.subr.mxu0 0.0
        %466 = vmatpush1.msra.mxu0 0.0
        %467 = vmatprep.subr.mxu0 0.0
        %468 = vmatpush1.msra.mxu0 0.0
        %469 = vmatprep.subr.mxu0 0.0
        %470 = vmatpush1.msra.mxu0 0.0
        %471 = vmatprep.subr.mxu0 0.0
        %472 = vmatpush1.msra.mxu0 0.0
        %473 = vmatprep.subr.mxu0 0.0
        %474 = vmatpush1.msra.mxu0 0.0
        %475 = vmatprep.subr.mxu0 0.0
        %476 = vmatpush1.msra.mxu0 0.0
        %477 = vmatprep.subr.mxu0 0.0
        %478 = vmatpush1.msra.mxu0 0.0
        %479 = vmatprep.subr.mxu0 0.0
        %480 = vmatpush1.msra.mxu0 0.0
        %481 = vmatprep.subr.mxu0 0.0
        %482 = vmatpush1.msra.mxu0 0.0
        %483 = vmatprep.subr.mxu0 0.0
        %484 = vmatpush1.msra.mxu0 0.0
        %485 = vmatprep.subr.mxu0 0.0
        %486 = vmatpush1.msra.mxu0 0.0
        %487 = vmatprep.subr.mxu0 0.0
        %488 = vmatpush1.msra.mxu0 0.0
        %489 = vmatprep.mubr.f32.mxu0 0.0
        %490 = vmatmul.mubr.f32.gmra.mrb[0].mxu0 %v420
        %v491 = vpop.f32.mrb[0].mxu0
        %v492 = vadd.f32 0.0, %v491
        %v493 = vpop.f32.mrb[0].mxu0
        %494 = vmatprep.mubr.f32.mxu0 0.0
        %495 = vmatmul.mubr.f32.gmra.mrb[0].mxu0 %v423
        %v496 = vpop.f32.mrb[0].mxu0
        %v497 = vadd.f32 0.0, %v496
        %v498 = vpop.f32.mrb[0].mxu0
        %499 = vdwg.mxu0
        %500 = vmatprep.subr.mxu0 0.0
        %501 = vmatpush1.msra.mxu0 %v411
        %502 = vmatprep.subr.mxu0 0.0
        %503 = vmatpush1.msra.mxu0 %v412
        %504 = vmatprep.subr.mxu0 0.0
        %505 = vmatpush1.msra.mxu0 %v413
        %506 = vmatprep.subr.mxu0 0.0
        %507 = vmatpush1.msra.mxu0 %v414
        %508 = vmatprep.subr.mxu0 0.0
        %509 = vmatpush1.msra.mxu0 0.0
        %510 = vmatprep.subr.mxu0 0.0
        %511 = vmatpush1.msra.mxu0 0.0
        %512 = vmatprep.subr.mxu0 0.0
        %513 = vmatpush1.msra.mxu0 0.0
        %514 = vmatprep.subr.mxu0 0.0
        %515 = vmatpush1.msra.mxu0 0.0
        %516 = vmatprep.subr.mxu0 0.0
        %517 = vmatpush1.msra.mxu0 0.0
        %518 = vmatprep.subr.mxu0 0.0
        %519 = vmatpush1.msra.mxu0 0.0
        %520 = vmatprep.subr.mxu0 0.0
        %521 = vmatpush1.msra.mxu0 0.0
        %522 = vmatprep.subr.mxu0 0.0
        %523 = vmatpush1.msra.mxu0 0.0
        %524 = vmatprep.subr.mxu0 0.0
        %525 = vmatpush1.msra.mxu0 0.0
        %526 = vmatprep.subr.mxu0 0.0
        %527 = vmatpush1.msra.mxu0 0.0
        %528 = vmatprep.subr.mxu0 0.0
        %529 = vmatpush1.msra.mxu0 0.0
        %530 = vmatprep.subr.mxu0 0.0
        %531 = vmatpush1.msra.mxu0 0.0
        %532 = vmatprep.subr.mxu0 0.0
        %533 = vmatpush1.msra.mxu0 0.0
        %534 = vmatprep.subr.mxu0 0.0
        %535 = vmatpush1.msra.mxu0 0.0
        %536 = vmatprep.subr.mxu0 0.0
        %537 = vmatpush1.msra.mxu0 0.0
        %538 = vmatprep.subr.mxu0 0.0
        %539 = vmatpush1.msra.mxu0 0.0
        %540 = vmatprep.subr.mxu0 0.0
        %541 = vmatpush1.msra.mxu0 0.0
        %542 = vmatprep.subr.mxu0 0.0
        %543 = vmatpush1.msra.mxu0 0.0
        %544 = vmatprep.subr.mxu0 0.0
        %545 = vmatpush1.msra.mxu0 0.0
        %546 = vmatprep.subr.mxu0 0.0
        %547 = vmatpush1.msra.mxu0 0.0
        %548 = vmatprep.subr.mxu0 0.0
        %549 = vmatpush1.msra.mxu0 0.0
        %550 = vmatprep.subr.mxu0 0.0
        %551 = vmatpush1.msra.mxu0 0.0
        %552 = vmatprep.subr.mxu0 0.0
        %553 = vmatpush1.msra.mxu0 0.0
        %554 = vmatprep.subr.mxu0 0.0
        %555 = vmatpush1.msra.mxu0 0.0
        %556 = vmatprep.subr.mxu0 0.0
        %557 = vmatpush1.msra.mxu0 0.0
        %558 = vmatprep.subr.mxu0 0.0
        %559 = vmatpush1.msra.mxu0 0.0
        %560 = vmatprep.subr.mxu0 0.0
        %561 = vmatpush1.msra.mxu0 0.0
        %562 = vmatprep.subr.mxu0 0.0
        %563 = vmatpush1.msra.mxu0 0.0
        %564 = vmatprep.mubr.f32.mxu0 0.0
        %565 = vmatmul.mubr.f32.gmra.mrb[0].mxu0 %v322
        %v566 = vpop.f32.mrb[0].mxu0
        %v567 = vadd.f32 %v492, %v566
        %v568 = vpop.f32.mrb[0].mxu0
        %569 = vmatprep.mubr.f32.mxu0 0.0
        %570 = vmatmul.mubr.f32.gmra.mrb[0].mxu0 %v325
        %v571 = vpop.f32.mrb[0].mxu0
        %v572 = vadd.f32 %v497, %v571
        %v573 = vpop.f32.mrb[0].mxu0
        %574 = vdwg.mxu0
        %v575 = vadd.f32 %v567, %v406
        %v576 = vadd.f32 %v572, %v406
        %577 = vst.msk [vmem:[%s209] sm:$0xff] %vm239, %v408
        %578 = vst.msk [vmem:[%s209 + $0x8] sm:$0xff] %vm239, %v409
        %579 = vst.msk [vmem:[%s216] sm:$0xff] %vm239, %v575
        %580 = vst.msk [vmem:[%s216 + $0x8] sm:$0xff] %vm239, %v576
        %s581 = sand.u32 %s99, 1
        %s582 = scalar_lea.sflag [#allocation4], %s581
        %s583 = sand.u32 %s99, 1
        %s584 = smul.addr %s583, 16
        %s585 = scalar_lea.vmem [#allocation5], %s584
        %s586 = sand.u32 %s125, 1
        %s587 = scalar_lea.sflag [#allocation7], %s586
        %s588 = sand.u32 %s125, 1
        %s589 = smul.addr %s588, 16
        %s590 = scalar_lea.vmem [#allocation6], %s589
        // Predicated region
        $region37: #{tpu_custom_call.1} parent=31 // pred_check
          %p591 = pneg %p109
        $region38: #{tpu_custom_call.1} parent=31 // pred_check_branch
          %593 = sbr.rel (%p591) target = $region40
        $region39: #{tpu_custom_call.1} parent=31 // pred_region
          %s595 = ssub.s32 256, 256
          %596 = vsyncadd %s582, %s595
          %s597 = smul.addr %s23, 2
          %s598 = smul.addr %s597, 128
          %s599 = scalar_lea.hbm %s3, %s598
          %s600 = sshll.u32 %s585, 4
          %s601 = int_to_ptr.vmem [resolvable:$true] %s600
          %606 = dma.vmem_to_hbm [thread:$0]  %s601, 256, %s599, %s582, 128, 128, 8
        $region40: #{tpu_custom_call.1} parent=31 // pred_fallthru
          _
        // Predicated region
        $region41: #{tpu_custom_call.1} parent=31 // pred_check
          %p607 = pneg %p135
        $region42: #{tpu_custom_call.1} parent=31 // pred_check_branch
          %609 = sbr.rel (%p607) target = $region44
        $region43: #{tpu_custom_call.1} parent=31 // pred_region
          %s611 = ssub.s32 256, 256
          %612 = vsyncadd %s587, %s611
          %s613 = smul.addr %s23, 2
          %s614 = smul.addr %s613, 128
          %s615 = scalar_lea.hbm %s4, %s614
          %s616 = sshll.u32 %s590, 4
          %s617 = int_to_ptr.vmem [resolvable:$true] %s616
          %622 = dma.vmem_to_hbm [thread:$0]  %s617, 256, %s615, %s587, 128, 128, 8
        $region44: #{tpu_custom_call.1} parent=31 // pred_fallthru
          _
      $region32: #{tpu_custom_call.1} parent=5 // pred_fallthru
        _
      %p623 = scmp.le.s32.totalorder 2, %s18
      // Predicated region
      $region45: #{tpu_custom_call.1} parent=5 // pred_check
        %p624 = pneg %p623
      $region46: #{tpu_custom_call.1} parent=5 // pred_check_branch
        %626 = sbr.rel (%p624) target = $region48
      $region47: #{tpu_custom_call.1} parent=5 // pred_region
        %s627 = ssub.s32 %s18, 2
        // Predicated region
        $region49: #{tpu_custom_call.1} parent=47 // pred_check
          %p628 = pneg %p115
        $region50: #{tpu_custom_call.1} parent=47 // pred_check_branch
          %630 = sbr.rel (%p628) target = $region52
        $region51: #{tpu_custom_call.1} parent=47 // pred_region
          %s631 = sand.u32 %s100, 1
          %s632 = scalar_lea.sflag [#allocation4], %s631
          %s633 = sand.u32 %s100, 1
          %s634 = smul.addr %s633, 16
          %s635 = scalar_lea.vmem [#allocation5], %s634
          %636 = dma.done %s632, 256
        $region52: #{tpu_custom_call.1} parent=47 // pred_fallthru
          _
        // Predicated region
        $region53: #{tpu_custom_call.1} parent=47 // pred_check
          %p637 = pneg %p141
        $region54: #{tpu_custom_call.1} parent=47 // pred_check_branch
          %639 = sbr.rel (%p637) target = $region56
        $region55: #{tpu_custom_call.1} parent=47 // pred_region
          %s640 = sand.u32 %s126, 1
          %s641 = scalar_lea.sflag [#allocation7], %s640
          %s642 = sand.u32 %s126, 1
          %s643 = smul.addr %s642, 16
          %s644 = scalar_lea.vmem [#allocation6], %s643
          %645 = dma.done %s641, 256
        $region56: #{tpu_custom_call.1} parent=47 // pred_fallthru
          _
      $region48: #{tpu_custom_call.1} parent=5 // pred_fallthru
        _
    $region6: #{tpu_custom_call.1} parent=1 // loop_footer
      %s22 = sadd.s32 1, %s18
    $region7: #{tpu_custom_call.1} parent=1 // loop_footer_branch
      %17 = sbr.rel target = $region3
    $region8: #{tpu_custom_call.1} parent=1 // loop_exit
      _
    %646 = vsyncpa [#allocation3], 1
    %s647 = scalar_lea.sflag [#allocation3], 1
    %648 = vsyncpa %s647, 1
    %649 = vsyncpa [#allocation4], 1
    %s650 = scalar_lea.sflag [#allocation4], 1
    %651 = vsyncpa %s650, 1
    %652 = vsyncpa [#allocation7], 1
    %s653 = scalar_lea.sflag [#allocation7], 1
    %654 = vsyncpa %s653, 1

</llo_original>
